<compile_context>
chip_gen: v7x
topology: tpu7x:2x2x1
jax: 0.10.0
libtpu: 0.0.40
codegen_flags: <defaults>
</compile_context>

<pallas_src>
import jax
import jax.numpy as jnp
from jax.experimental import pallas as pl
from jax.experimental.pallas import tpu as pltpu

_LANE = 128
_NUM_PARALLEL = 2      # grid axis 0 ("parallel"): 2 TensorCores on v7x
_MAX_TILE_N = 2048     # batch lanes per block (tiny VMEM footprint since C is small)


def _round_up(x, m):
    return ((x + m - 1) // m) * m


def _ce_loss_kernel(x_ref, tgt_ref, sgn_ref, cw_ref, num_ref, den_ref,
                    num_acc, den_acc):
    # grid = (parallel cores, batch tiles); axis 1 is the accumulation axis.
    i = pl.program_id(1)

    @pl.when(i == 0)
    def _init():
        num_acc[...] = jnp.zeros_like(num_acc)
        den_acc[...] = jnp.zeros_like(den_acc)

    x = x_ref[...].astype(jnp.float32)           # (C, TN)  classes on sublanes
    tgt = tgt_ref[...]                           # (1, TN)  int32
    sgn = sgn_ref[...]                           # (1, TN)  int32
    cw = cw_ref[...].astype(jnp.float32)         # (K, 1)

    c, tn = x.shape
    k = cw.shape[0]

    # One exp per element (single EUP pass), reused for numerator and denom.
    ex = jnp.exp(x)                                             # (C, TN)
    sum_ex = jnp.sum(ex, axis=0, keepdims=True)                 # (1, TN)

    # Numerator: exp(x[target, j]) selected without a float one-hot temporary.
    cls = jax.lax.broadcasted_iota(jnp.int32, (c, tn), 0)
    num_sel = jnp.sum(jnp.where(cls == tgt, ex, 0.0), axis=0, keepdims=True)

    p_pred = num_sel / sum_ex                    # exact divide (matches ref to 1e-5)
    loss_ce = -jnp.log(p_pred + 1e-8)            # (1, TN)

    # class_weights[sign] via a small K-row select; padded lanes carry
    # sign == K (out of range) so they select nothing -> weight 0.
    kidx = jax.lax.broadcasted_iota(jnp.int32, (k, tn), 0)
    w = jnp.sum(jnp.where(kidx == sgn, cw, 0.0), axis=0, keepdims=True)  # (1, TN)

    num_acc[...] += jnp.sum(loss_ce * w, axis=1, keepdims=True)
    den_acc[...] += jnp.sum(w, axis=1, keepdims=True)

    @pl.when(i == pl.num_programs(1) - 1)
    def _finalize():
        # Broadcast the scalar partials into the lane-dense output blocks;
        # the wrapper reads element [:, 0, 0] of each.
        num_ref[...] = jnp.broadcast_to(num_acc[...], num_ref.shape)
        den_ref[...] = jnp.broadcast_to(den_acc[...], den_ref.shape)


def ce_loss(x, target, sign, class_weights):
    """x: (N, C) logits; target: (N,) int; sign: (N, S) int;
    class_weights: (K,) float. Returns scalar float32 loss."""
    n, c = x.shape
    k = class_weights.shape[0]

    tile_n = min(_MAX_TILE_N, _round_up(pl.cdiv(n, _NUM_PARALLEL), _LANE))
    blocks_per_core = pl.cdiv(n, _NUM_PARALLEL * tile_n)
    n_pad = _NUM_PARALLEL * blocks_per_core * tile_n

    # Lane-dense layout: batch on the 128-lane axis, classes on sublanes.
    # (Layout plumbing only; assumes small num_class as in the module.)
    x_cn = jnp.pad(x, ((0, n_pad - n), (0, 0))).T                       # (C, n_pad)
    tgt = jnp.pad(target.astype(jnp.int32), (0, n_pad - n)).reshape(1, n_pad)
    sgn = jnp.pad(sign[:, 0].astype(jnp.int32), (0, n_pad - n),
                  constant_values=k).reshape(1, n_pad)                  # pad -> weight 0
    cw = class_weights.reshape(k, 1)

    data_map = lambda p, i: (0, p * blocks_per_core + i)

    num_out, den_out = pl.pallas_call(
        _ce_loss_kernel,
        grid=(_NUM_PARALLEL, blocks_per_core),
        in_specs=[
            pl.BlockSpec((c, tile_n), data_map),
            pl.BlockSpec((1, tile_n), data_map),
            pl.BlockSpec((1, tile_n), data_map),
            pl.BlockSpec((k, 1), lambda p, i: (0, 0)),
        ],
        out_specs=(
            pl.BlockSpec((1, 8, _LANE), lambda p, i: (p, 0, 0)),
            pl.BlockSpec((1, 8, _LANE), lambda p, i: (p, 0, 0)),
        ),
        out_shape=(
            jax.ShapeDtypeStruct((_NUM_PARALLEL, 8, _LANE), jnp.float32),
            jax.ShapeDtypeStruct((_NUM_PARALLEL, 8, _LANE), jnp.float32),
        ),
        scratch_shapes=[pltpu.VMEM((1, 1), jnp.float32),
                        pltpu.VMEM((1, 1), jnp.float32)],
        compiler_params=pltpu.CompilerParams(
            dimension_semantics=("parallel", "arbitrary"),
            vmem_limit_bytes=32 * 1024 * 1024),
    )(x_cn, tgt, sgn, cw)

    # Per-core partials -> scalar loss; sum(w) normalization is one divide.
    num = jnp.sum(num_out[:, 0, 0])
    den = jnp.sum(den_out[:, 0, 0])
    return num / den


def ce_loss_ref(x, target, sign, class_weights):
    """Pure-JAX reference mirroring the PyTorch forward."""
    x = x.astype(jnp.float32)
    onehot = jax.nn.one_hot(target, x.shape[1], dtype=jnp.float32)
    ex = jnp.exp(x)
    p_pred = jnp.sum(onehot * ex, axis=1, keepdims=True) / jnp.sum(
        ex, axis=1, keepdims=True)
    loss_ce = -jnp.log(p_pred + 1e-8)
    w = class_weights[sign[:, 0]]
    w = w / jnp.sum(w)
    return jnp.sum(loss_ce * w.reshape(-1, 1))


if __name__ == "__main__":
    key = jax.random.PRNGKey(0)
    k1, k2, k3, k4, k5, k6 = jax.random.split(key, 6)

    # Small shapes consistent with the module: flat (N, C) logits.
    N, C, K = 8, 4, 6
    x = jax.random.normal(k1, (N, C), dtype=jnp.float32)
    target = jax.random.randint(k2, (N,), 0, C, dtype=jnp.int32)
    sign = jax.random.randint(k3, (N, 1), 0, K, dtype=jnp.int32)
    class_weights = jnp.array([0.5, 1.0, 1.5, 2.0, 2.5, 3.0], dtype=jnp.float32)

    out = jax.block_until_ready(ce_loss(x, target, sign, class_weights))
    ref = ce_loss_ref(x, target, sign, class_weights)
    assert jnp.allclose(out, ref, rtol=1e-5, atol=1e-5), (out, ref)

    # Larger batch: exercises padding, multiple grid steps and accumulation.
    N2 = 5000
    x2 = jax.random.normal(k4, (N2, C), dtype=jnp.float32)
    t2 = jax.random.randint(k5, (N2,), 0, C, dtype=jnp.int32)
    s2 = jax.random.randint(k6, (N2, 2), 0, K, dtype=jnp.int32)
    out2 = jax.block_until_ready(ce_loss(x2, t2, s2, class_weights))
    ref2 = ce_loss_ref(x2, t2, s2, class_weights)
    assert jnp.allclose(out2, ref2, rtol=1e-5, atol=1e-5), (out2, ref2)

    print("KERNEL_OK")
</pallas_src>

<mosaic_0001>
module attributes {stable_mosaic.version = 11 : i64} {
  func.func @_ce_loss_kernel(%arg0: i32, %arg1: i32, %arg2: memref<4x128xf32, #tpu.memory_space<vmem>>, %arg3: memref<1x128xi32, #tpu.memory_space<vmem>>, %arg4: memref<1x128xi32, #tpu.memory_space<vmem>>, %arg5: memref<6x1xf32, #tpu.memory_space<vmem>>, %arg6: memref<1x8x128xf32, #tpu.memory_space<vmem>>, %arg7: memref<1x8x128xf32, #tpu.memory_space<vmem>>, %arg8: memref<1x1xf32, #tpu.memory_space<vmem>>, %arg9: memref<1x1xf32, #tpu.memory_space<vmem>>) attributes {dimension_semantics = [#tpu.dimension_semantics<parallel>, #tpu.dimension_semantics<arbitrary>], iteration_bounds = array<i64: 2, 1>, scalar_prefetch = 0 : i64, scratch_operands = 2 : i64, tpu.core_type = #tpu.core_type<tc>, window_params = [{transform_indices = @transform_0, window_bounds = array<i64: 4, 128>}, {transform_indices = @transform_1, window_bounds = array<i64: 1, 128>}, {transform_indices = @transform_2, window_bounds = array<i64: 1, 128>}, {pipeline_mode = #tpu.pipeline_mode<synchronous>, transform_indices = @transform_3, window_bounds = array<i64: 6, 1>}, {transform_indices = @transform_4, window_bounds = array<i64: 1, 8, 128>}, {transform_indices = @transform_5, window_bounds = array<i64: 1, 8, 128>}]} {
    %c0_i32 = arith.constant 0 : i32
    %0 = arith.cmpi eq, %arg1, %c0_i32 : i32
    %1 = arith.extui %0 : i1 to i32
    %c0_i32_0 = arith.constant 0 : i32
    %2 = arith.cmpi ne, %1, %c0_i32_0 : i32
    scf.if %2 {
      %cst_26 = arith.constant 0.000000e+00 : f32
      %46 = vector.broadcast %cst_26 : f32 to vector<1x1xf32>
      %c0_27 = arith.constant 0 : index
      %c0_28 = arith.constant 0 : index
      %47 = vector.load %arg8[%c0_27, %c0_28] : memref<1x1xf32, #tpu.memory_space<vmem>>, vector<1x1xf32>
      tpu.vector_store %arg8[%c0_27, %c0_28], %46 {strides = array<i32>} : memref<1x1xf32, #tpu.memory_space<vmem>>, vector<1x1xf32>,
      %cst_29 = arith.constant 0.000000e+00 : f32
      %48 = vector.broadcast %cst_29 : f32 to vector<1x1xf32>
      %c0_30 = arith.constant 0 : index
      %c0_31 = arith.constant 0 : index
      %49 = vector.load %arg9[%c0_30, %c0_31] : memref<1x1xf32, #tpu.memory_space<vmem>>, vector<1x1xf32>
      tpu.vector_store %arg9[%c0_30, %c0_31], %48 {strides = array<i32>} : memref<1x1xf32, #tpu.memory_space<vmem>>, vector<1x1xf32>,
    } else {
    }
    %c0 = arith.constant 0 : index
    %c0_1 = arith.constant 0 : index
    %3 = vector.load %arg2[%c0, %c0_1] : memref<4x128xf32, #tpu.memory_space<vmem>>, vector<4x128xf32>
    %c0_2 = arith.constant 0 : index
    %c0_3 = arith.constant 0 : index
    %4 = vector.load %arg3[%c0_2, %c0_3] : memref<1x128xi32, #tpu.memory_space<vmem>>, vector<1x128xi32>
    %c0_4 = arith.constant 0 : index
    %c0_5 = arith.constant 0 : index
    %5 = vector.load %arg4[%c0_4, %c0_5] : memref<1x128xi32, #tpu.memory_space<vmem>>, vector<1x128xi32>
    %c0_6 = arith.constant 0 : index
    %c0_7 = arith.constant 0 : index
    %6 = vector.load %arg5[%c0_6, %c0_7] : memref<6x1xf32, #tpu.memory_space<vmem>>, vector<6x1xf32>
    %7 = math.exp %3 : vector<4x128xf32>
    %cst = arith.constant dense<0.000000e+00> : vector<128xf32>
    %8 = vector.multi_reduction <add>, %7, %cst [0] : vector<4x128xf32> to vector<128xf32>
    %9 = vector.shape_cast %8 : vector<128xf32> to vector<1x128xf32>
    %10 = tpu.iota {dimensions = array<i32: 0>} : vector<4x128xi32>
    %11 = vector.broadcast %4 : vector<1x128xi32> to vector<4x128xi32>
    %12 = arith.cmpi eq, %10, %11 : vector<4x128xi32>
    %cst_8 = arith.constant 0.000000e+00 : f32
    %13 = vector.broadcast %cst_8 : f32 to vector<4x128xf32>
    %14 = arith.select %12, %7, %13 : vector<4x128xi1>, vector<4x128xf32>
    %cst_9 = arith.constant dense<0.000000e+00> : vector<128xf32>
    %15 = vector.multi_reduction <add>, %14, %cst_9 [0] : vector<4x128xf32> to vector<128xf32>
    %16 = vector.shape_cast %15 : vector<128xf32> to vector<1x128xf32>
    %17 = arith.divf %16, %9 : vector<1x128xf32>
    %cst_10 = arith.constant 9.99999993E-9 : f32
    %18 = vector.broadcast %cst_10 : f32 to vector<1x128xf32>
    %19 = arith.addf %17, %18 : vector<1x128xf32>
    %20 = math.log %19 : vector<1x128xf32>
    %cst_11 = arith.constant 0.000000e+00 : f32
    %21 = vector.broadcast %cst_11 : f32 to vector<1x128xf32>
    %22 = arith.subf %21, %20 : vector<1x128xf32>
    %23 = tpu.iota {dimensions = array<i32: 0>} : vector<6x128xi32>
    %24 = vector.broadcast %5 : vector<1x128xi32> to vector<6x128xi32>
    %25 = arith.cmpi eq, %23, %24 : vector<6x128xi32>
    %cst_12 = arith.constant 0.000000e+00 : f32
    %26 = vector.shape_cast %6 : vector<6x1xf32> to vector<6x1xf32>
    %27 = vector.broadcast %26 : vector<6x1xf32> to vector<6x128xf32>
    %28 = vector.broadcast %cst_12 : f32 to vector<6x128xf32>
    %29 = arith.select %25, %27, %28 : vector<6x128xi1>, vector<6x128xf32>
    %cst_13 = arith.constant dense<0.000000e+00> : vector<128xf32>
    %30 = vector.multi_reduction <add>, %29, %cst_13 [0] : vector<6x128xf32> to vector<128xf32>
    %31 = vector.shape_cast %30 : vector<128xf32> to vector<1x128xf32>
    %c0_14 = arith.constant 0 : index
    %c0_15 = arith.constant 0 : index
    %32 = vector.load %arg8[%c0_14, %c0_15] : memref<1x1xf32, #tpu.memory_space<vmem>>, vector<1x1xf32>
    %33 = arith.mulf %22, %31 : vector<1x128xf32>
    %cst_16 = arith.constant dense<0.000000e+00> : vector<1xf32>
    %34 = vector.multi_reduction <add>, %33, %cst_16 [1] : vector<1x128xf32> to vector<1xf32>
    %35 = vector.shape_cast %34 : vector<1xf32> to vector<1x1xf32>
    %36 = arith.addf %32, %35 : vector<1x1xf32>
    %c0_17 = arith.constant 0 : index
    %c0_18 = arith.constant 0 : index
    %37 = vector.load %arg8[%c0_17, %c0_18] : memref<1x1xf32, #tpu.memory_space<vmem>>, vector<1x1xf32>
    tpu.vector_store %arg8[%c0_17, %c0_18], %36 {strides = array<i32>} : memref<1x1xf32, #tpu.memory_space<vmem>>, vector<1x1xf32>,
    %c0_19 = arith.constant 0 : index
    %c0_20 = arith.constant 0 : index
    %38 = vector.load %arg9[%c0_19, %c0_20] : memref<1x1xf32, #tpu.memory_space<vmem>>, vector<1x1xf32>
    %cst_21 = arith.constant dense<0.000000e+00> : vector<1xf32>
    %39 = vector.multi_reduction <add>, %31, %cst_21 [1] : vector<1x128xf32> to vector<1xf32>
    %40 = vector.shape_cast %39 : vector<1xf32> to vector<1x1xf32>
    %41 = arith.addf %38, %40 : vector<1x1xf32>
    %c0_22 = arith.constant 0 : index
    %c0_23 = arith.constant 0 : index
    %42 = vector.load %arg9[%c0_22, %c0_23] : memref<1x1xf32, #tpu.memory_space<vmem>>, vector<1x1xf32>
    tpu.vector_store %arg9[%c0_22, %c0_23], %41 {strides = array<i32>} : memref<1x1xf32, #tpu.memory_space<vmem>>, vector<1x1xf32>,
    %c0_i32_24 = arith.constant 0 : i32
    %43 = arith.cmpi eq, %arg1, %c0_i32_24 : i32
    %44 = arith.extui %43 : i1 to i32
    %c0_i32_25 = arith.constant 0 : i32
    %45 = arith.cmpi ne, %44, %c0_i32_25 : i32
    scf.if %45 {
      %c0_26 = arith.constant 0 : index
      %c0_27 = arith.constant 0 : index
      %46 = vector.load %arg8[%c0_26, %c0_27] : memref<1x1xf32, #tpu.memory_space<vmem>>, vector<1x1xf32>
      %47 = vector.shape_cast %46 : vector<1x1xf32> to vector<1x1x1xf32>
      %48 = vector.broadcast %47 : vector<1x1x1xf32> to vector<1x8x128xf32>
      %c0_28 = arith.constant 0 : index
      %c0_29 = arith.constant 0 : index
      %c0_30 = arith.constant 0 : index
      %49 = vector.load %arg6[%c0_28, %c0_29, %c0_30] : memref<1x8x128xf32, #tpu.memory_space<vmem>>, vector<1x8x128xf32>
      tpu.vector_store %arg6[%c0_28, %c0_29, %c0_30], %48 {strides = array<i32>} : memref<1x8x128xf32, #tpu.memory_space<vmem>>, vector<1x8x128xf32>,
      %c0_31 = arith.constant 0 : index
      %c0_32 = arith.constant 0 : index
      %50 = vector.load %arg9[%c0_31, %c0_32] : memref<1x1xf32, #tpu.memory_space<vmem>>, vector<1x1xf32>
      %51 = vector.shape_cast %50 : vector<1x1xf32> to vector<1x1x1xf32>
      %52 = vector.broadcast %51 : vector<1x1x1xf32> to vector<1x8x128xf32>
      %c0_33 = arith.constant 0 : index
      %c0_34 = arith.constant 0 : index
      %c0_35 = arith.constant 0 : index
      %53 = vector.load %arg7[%c0_33, %c0_34, %c0_35] : memref<1x8x128xf32, #tpu.memory_space<vmem>>, vector<1x8x128xf32>
      tpu.vector_store %arg7[%c0_33, %c0_34, %c0_35], %52 {strides = array<i32>} : memref<1x8x128xf32, #tpu.memory_space<vmem>>, vector<1x8x128xf32>,
    } else {
    }
    return
  }
  func.func @transform_0(%arg0: i32, %arg1: i32) -> (i32, i32) {
    %c1_i32 = arith.constant 1 : i32
    %0 = arith.muli %arg0, %c1_i32 : i32
    %1 = arith.addi %0, %arg1 : i32
    %c0_i32 = arith.constant 0 : i32
    %c0_i32_0 = arith.constant 0 : i32
    return %c0_i32, %1 : i32, i32
  }
  func.func @transform_1(%arg0: i32, %arg1: i32) -> (i32, i32) {
    %c1_i32 = arith.constant 1 : i32
    %0 = arith.muli %arg0, %c1_i32 : i32
    %1 = arith.addi %0, %arg1 : i32
    %c0_i32 = arith.constant 0 : i32
    %c0_i32_0 = arith.constant 0 : i32
    return %c0_i32, %1 : i32, i32
  }
  func.func @transform_2(%arg0: i32, %arg1: i32) -> (i32, i32) {
    %c1_i32 = arith.constant 1 : i32
    %0 = arith.muli %arg0, %c1_i32 : i32
    %1 = arith.addi %0, %arg1 : i32
    %c0_i32 = arith.constant 0 : i32
    %c0_i32_0 = arith.constant 0 : i32
    return %c0_i32, %1 : i32, i32
  }
  func.func @transform_3(%arg0: i32, %arg1: i32) -> (i32, i32) {
    %c0_i32 = arith.constant 0 : i32
    %c0_i32_0 = arith.constant 0 : i32
    %c0_i32_1 = arith.constant 0 : i32
    return %c0_i32, %c0_i32_0 : i32, i32
  }
  func.func @transform_4(%arg0: i32, %arg1: i32) -> (i32, i32, i32) {
    %c0_i32 = arith.constant 0 : i32
    %c0_i32_0 = arith.constant 0 : i32
    %c0_i32_1 = arith.constant 0 : i32
    return %arg0, %c0_i32, %c0_i32_0 : i32, i32, i32
  }
  func.func @transform_5(%arg0: i32, %arg1: i32) -> (i32, i32, i32) {
    %c0_i32 = arith.constant 0 : i32
    %c0_i32_0 = arith.constant 0 : i32
    %c0_i32_1 = arith.constant 0 : i32
    return %arg0, %c0_i32, %c0_i32_0 : i32, i32, i32
  }
}

</mosaic_0001>

<llo_original>
// kernel: tpu_custom_call.1
$region0: #{tpu_custom_call.1}
  #allocation0 [shape = 'u32[]', space=smem, size = 0x4, offset = 0x4, fixed_abs, tag = 'smem constant byte address 0x4 - core index']
  #allocation1 [shape = 'u32[144,128]{1,0:T(1,128)}', space=vmem, size = 0x12000, scoped, tag = 'internal scratch']
  #allocation2 [shape = 'f32[1,1]{1,0:T(1,128)}', space=vmem, size = 0x200, scoped, tag = 'scratch operand']
  #allocation3 [shape = 'f32[1,1]{1,0:T(1,128)}', space=vmem, size = 0x200, scoped, tag = 'scratch operand']
  %s0 = inlined_call_operand.vmem [shape: f32[4,256], index: 0, kind: input, shape index: {}]
  %s1 = inlined_call_operand.vmem [shape: s32[1,256], index: 1, kind: input, shape index: {}]
  %s2 = inlined_call_operand.vmem [shape: s32[1,256], index: 2, kind: input, shape index: {}]
  %s3 = inlined_call_operand.vmem [shape: f32[6,1], index: 3, kind: input, shape index: {}]
  %s4 = inlined_call_operand.hbm [shape: f32[2,8,128], index: 4, kind: output, shape index: {0}]
  %s5 = inlined_call_operand.hbm [shape: f32[2,8,128], index: 5, kind: output, shape index: {1}]
  %6 = xla_tuple %s4, %s5
  %s7 = sld [smem:[#allocation0]]
  $region65: #{tpu_custom_call.1} parent=0
    _
  %s9 = ssub.s32 1, %s7
  %s10 = scalar_select 0, %s9, %s7
  $region1: #{tpu_custom_call.1} parent=0
    #allocation4 [shape = 'u8[8192]{0}', space=vmem, size = 0x2000, scoped, tag = 'output window, operand 0']
    #allocation5 [shape = 's32[2]{0}', space=sflag, size = 0x8, scoped, tag = 'scoped memory for tpu_custom_call.1']
    #allocation6 [shape = 'u8[8192]{0}', space=vmem, size = 0x2000, scoped, tag = 'output window, operand 1']
    #allocation7 [shape = 's32[2]{0}', space=sflag, size = 0x8, scoped, tag = 'scoped memory for tpu_custom_call.1']
    %11 = vsyncpa [#allocation5], 0
    %s12 = scalar_lea.sflag [#allocation5], 1
    %13 = vsyncpa %s12, 0
    %14 = vsyncpa [#allocation7], 0
    %s15 = scalar_lea.sflag [#allocation7], 1
    %16 = vsyncpa %s15, 0
    loop: start=0, step=1, limit=4
    $region2: #{tpu_custom_call.1} parent=1 // loop_pre_header
      _
    $region3: #{tpu_custom_call.1} parent=1 // loop_header
      %s18 = sphi 0, %s22
      %p19 = scmp.ge.s32.totalorder %s18, 4
      %s25 = sphi 0, %s37
      %s26 = sphi 0, %s33
      %s27 = sphi 0, %s25
      %s28 = sphi 0, %s26
      %s29 = sphi 0, %s27
      %s30 = sphi 0, %s28
      %s42 = sphi 0, %s44
      %s45 = sphi 0, %s42
      %s46 = sphi 0, %s45
      %s62 = sphi 0, %s46
      %s70 = sphi 0, %s72
      %s73 = sphi 0, %s70
      %s74 = sphi 0, %s73
      %s90 = sphi 0, %s74
      %s98 = sphi 0, %s100
      %s101 = sphi 0, %s98
      %s102 = sphi 0, %s101
      %s118 = sphi 0, %s102
      %s122 = sphi 0, %s122
      %s124 = sphi 0, %s122
      %s125 = sphi 0, %s124
      %s139 = sphi 0, %s125
      %s145 = sphi 0, %s147
      %s148 = sphi 0, %s145
      %s149 = sphi 0, %s148
      %s165 = sphi 0, %s149
      %s171 = sphi 0, %s173
      %s174 = sphi 0, %s171
      %s175 = sphi 0, %s174
      %s191 = sphi 0, %s175
    $region4: #{tpu_custom_call.1} parent=1 // loop_header_branch
      %21 = sbr.rel (%p19) target = $region8
    $region5: #{tpu_custom_call.1} parent=1 // loop_body
      %s23 = ssub.s32 %s18, 1
      %s24 = ssub.s32 %s18, 2
      %s31 = sadd.s32 1, %s26
      %p32 = scmp.ge.s32.totalorder %s31, 1
      %s33 = scalar_select %p32, 0, %s31
      %s34 = sadd.s32 1, %s25
      %s35 = scalar_select %p32, %s34, %s25
      %p36 = scmp.ge.s32.totalorder %s35, 2
      %s37 = scalar_select %p36, 0, %s35
      %s38 = sadd.s32 %s25, %s26
      %s39 = sadd.s32 %s37, %s33
      %s40 = ssub.s32 %s38, %s39
      %p41 = scmp.eq.s32.totalorder %s40, 0
      %s43 = sadd.s32 %s42, 1
      %s44 = scalar_select %p41, %s42, %s43
      %p47 = pneg %p41
      %p48 = scmp.eq.s32.totalorder %s18, 1
      %p49 = por %p47, %p48
      %p50 = scmp.ne.s32.totalorder %s42, %s45
      %p51 = scmp.eq.s32.totalorder %s18, 0
      %p52 = por %p50, %p51
      %p53 = scmp.ne.s32.totalorder %s42, %s45
      %p54 = scmp.eq.s32.totalorder %s23, 1
      %p55 = por %p53, %p54
      %p56 = scmp.ne.s32.totalorder %s45, %s46
      %p57 = scmp.eq.s32.totalorder %s23, 0
      %p58 = por %p56, %p57
      %p59 = scmp.ne.s32.totalorder %s45, %s46
      %p60 = scmp.eq.s32.totalorder %s24, 1
      %p61 = por %p59, %p60
      %p63 = scmp.ne.s32.totalorder %s46, %s62
      %p64 = scmp.eq.s32.totalorder %s24, 0
      %p65 = por %p63, %p64
      %s66 = sadd.s32 %s25, %s26
      %s67 = sadd.s32 %s37, %s33
      %s68 = ssub.s32 %s66, %s67
      %p69 = scmp.eq.s32.totalorder %s68, 0
      %s71 = sadd.s32 %s70, 1
      %s72 = scalar_select %p69, %s70, %s71
      %p75 = pneg %p69
      %p76 = scmp.eq.s32.totalorder %s18, 1
      %p77 = por %p75, %p76
      %p78 = scmp.ne.s32.totalorder %s70, %s73
      %p79 = scmp.eq.s32.totalorder %s18, 0
      %p80 = por %p78, %p79
      %p81 = scmp.ne.s32.totalorder %s70, %s73
      %p82 = scmp.eq.s32.totalorder %s23, 1
      %p83 = por %p81, %p82
      %p84 = scmp.ne.s32.totalorder %s73, %s74
      %p85 = scmp.eq.s32.totalorder %s23, 0
      %p86 = por %p84, %p85
      %p87 = scmp.ne.s32.totalorder %s73, %s74
      %p88 = scmp.eq.s32.totalorder %s24, 1
      %p89 = por %p87, %p88
      %p91 = scmp.ne.s32.totalorder %s74, %s90
      %p92 = scmp.eq.s32.totalorder %s24, 0
      %p93 = por %p91, %p92
      %s94 = sadd.s32 %s25, %s26
      %s95 = sadd.s32 %s37, %s33
      %s96 = ssub.s32 %s94, %s95
      %p97 = scmp.eq.s32.totalorder %s96, 0
      %s99 = sadd.s32 %s98, 1
      %s100 = scalar_select %p97, %s98, %s99
      %p103 = pneg %p97
      %p104 = scmp.eq.s32.totalorder %s18, 1
      %p105 = por %p103, %p104
      %p106 = scmp.ne.s32.totalorder %s98, %s101
      %p107 = scmp.eq.s32.totalorder %s18, 0
      %p108 = por %p106, %p107
      %p109 = scmp.ne.s32.totalorder %s98, %s101
      %p110 = scmp.eq.s32.totalorder %s23, 1
      %p111 = por %p109, %p110
      %p112 = scmp.ne.s32.totalorder %s101, %s102
      %p113 = scmp.eq.s32.totalorder %s23, 0
      %p114 = por %p112, %p113
      %p115 = scmp.ne.s32.totalorder %s101, %s102
      %p116 = scmp.eq.s32.totalorder %s24, 1
      %p117 = por %p115, %p116
      %p119 = scmp.ne.s32.totalorder %s102, %s118
      %p120 = scmp.eq.s32.totalorder %s24, 0
      %p121 = por %p119, %p120
      %s123 = sadd.s32 %s122, 1
      %p126 = scmp.eq.s32.totalorder %s18, 1
      %p127 = scmp.ne.s32.totalorder %s122, %s124
      %p128 = scmp.eq.s32.totalorder %s18, 0
      %p129 = por %p127, %p128
      %p130 = scmp.ne.s32.totalorder %s122, %s124
      %p131 = scmp.eq.s32.totalorder %s23, 1
      %p132 = por %p130, %p131
      %p133 = scmp.ne.s32.totalorder %s124, %s125
      %p134 = scmp.eq.s32.totalorder %s23, 0
      %p135 = por %p133, %p134
      %p136 = scmp.ne.s32.totalorder %s124, %s125
      %p137 = scmp.eq.s32.totalorder %s24, 1
      %p138 = por %p136, %p137
      %p140 = scmp.ne.s32.totalorder %s125, %s139
      %p141 = scmp.eq.s32.totalorder %s24, 0
      %p142 = por %p140, %p141
      %s143 = ssub.s32 %s25, %s37
      %p144 = scmp.eq.s32.totalorder %s143, 0
      %s146 = sadd.s32 %s145, 1
      %s147 = scalar_select %p144, %s145, %s146
      %p150 = pneg %p144
      %p151 = scmp.eq.s32.totalorder %s18, 1
      %p152 = por %p150, %p151
      %p153 = scmp.ne.s32.totalorder %s145, %s148
      %p154 = scmp.eq.s32.totalorder %s18, 0
      %p155 = por %p153, %p154
      %p156 = scmp.ne.s32.totalorder %s145, %s148
      %p157 = scmp.eq.s32.totalorder %s23, 1
      %p158 = por %p156, %p157
      %p159 = scmp.ne.s32.totalorder %s148, %s149
      %p160 = scmp.eq.s32.totalorder %s23, 0
      %p161 = por %p159, %p160
      %p162 = scmp.ne.s32.totalorder %s148, %s149
      %p163 = scmp.eq.s32.totalorder %s24, 1
      %p164 = por %p162, %p163
      %p166 = scmp.ne.s32.totalorder %s149, %s165
      %p167 = scmp.eq.s32.totalorder %s24, 0
      %p168 = por %p166, %p167
      %s169 = ssub.s32 %s25, %s37
      %p170 = scmp.eq.s32.totalorder %s169, 0
      %s172 = sadd.s32 %s171, 1
      %s173 = scalar_select %p170, %s171, %s172
      %p176 = pneg %p170
      %p177 = scmp.eq.s32.totalorder %s18, 1
      %p178 = por %p176, %p177
      %p179 = scmp.ne.s32.totalorder %s171, %s174
      %p180 = scmp.eq.s32.totalorder %s18, 0
      %p181 = por %p179, %p180
      %p182 = scmp.ne.s32.totalorder %s171, %s174
      %p183 = scmp.eq.s32.totalorder %s23, 1
      %p184 = por %p182, %p183
      %p185 = scmp.ne.s32.totalorder %s174, %s175
      %p186 = scmp.eq.s32.totalorder %s23, 0
      %p187 = por %p185, %p186
      %p188 = scmp.ne.s32.totalorder %s174, %s175
      %p189 = scmp.eq.s32.totalorder %s24, 1
      %p190 = por %p188, %p189
      %p192 = scmp.ne.s32.totalorder %s175, %s191
      %p193 = scmp.eq.s32.totalorder %s24, 0
      %p194 = por %p192, %p193
      %p195 = scmp.le.s32.totalorder 1, %s18
      %p196 = scmp.lt.s32.totalorder %s18, 3
      %p197 = pnand %p195, %p196
      %p198 = pneg %p197
      // Predicated region
      $region9: #{tpu_custom_call.1} parent=5 // pred_check
        _
      $region10: #{tpu_custom_call.1} parent=5 // pred_check_branch
        %200 = sbr.rel (%p197) target = $region12
      $region11: #{tpu_custom_call.1} parent=5 // pred_region
        %s201 = ssub.s32 %s18, 1
        // Predicated region
        $region13: #{tpu_custom_call.1} parent=11 // pred_check
          %p202 = pneg %p135
        $region14: #{tpu_custom_call.1} parent=11 // pred_check_branch
          %204 = sbr.rel (%p202) target = $region16
        $region15: #{tpu_custom_call.1} parent=11 // pred_region
          _
        $region16: #{tpu_custom_call.1} parent=11 // pred_fallthru
          _
      $region12: #{tpu_custom_call.1} parent=5 // pred_fallthru
        _
      %p205 = scmp.lt.s32.totalorder %s18, 2
      // Predicated region
      $region17: #{tpu_custom_call.1} parent=5 // pred_check
        %p206 = pneg %p205
      $region18: #{tpu_custom_call.1} parent=5 // pred_check_branch
        %208 = sbr.rel (%p206) target = $region20
      $region19: #{tpu_custom_call.1} parent=5 // pred_region
        // Predicated region
        $region21: #{tpu_custom_call.1} parent=19 // pred_check
          %p209 = pneg %p52
        $region22: #{tpu_custom_call.1} parent=19 // pred_check_branch
          %211 = sbr.rel (%p209) target = $region24
        $region23: #{tpu_custom_call.1} parent=19 // pred_region
          %s212 = sadd.s32 %s25, %s26
          %p213 = scmp.lt.s32.totalorder %s212, 1
          %s214 = scalar_select %p213, %s212, 1
          %s215 = smul.addr %s214, 4
          %s216 = scalar_lea.vmem %s0, %s215
          %s217 = sadd.s32 %s25, %s26
        $region24: #{tpu_custom_call.1} parent=19 // pred_fallthru
          _
        // Predicated region
        $region25: #{tpu_custom_call.1} parent=19 // pred_check
          %p218 = pneg %p80
        $region26: #{tpu_custom_call.1} parent=19 // pred_check_branch
          %220 = sbr.rel (%p218) target = $region28
        $region27: #{tpu_custom_call.1} parent=19 // pred_region
          %s221 = sadd.s32 %s25, %s26
          %p222 = scmp.lt.s32.totalorder %s221, 1
          %s223 = scalar_select %p222, %s221, 1
          %s224 = scalar_lea.vmem %s1, %s223
          %s225 = sadd.s32 %s25, %s26
        $region28: #{tpu_custom_call.1} parent=19 // pred_fallthru
          _
        // Predicated region
        $region29: #{tpu_custom_call.1} parent=19 // pred_check
          %p226 = pneg %p108
        $region30: #{tpu_custom_call.1} parent=19 // pred_check_branch
          %228 = sbr.rel (%p226) target = $region32
        $region31: #{tpu_custom_call.1} parent=19 // pred_region
          %s229 = sadd.s32 %s25, %s26
          %p230 = scmp.lt.s32.totalorder %s229, 1
          %s231 = scalar_select %p230, %s229, 1
          %s232 = scalar_lea.vmem %s2, %s231
          %s233 = sadd.s32 %s25, %s26
        $region32: #{tpu_custom_call.1} parent=19 // pred_fallthru
          _
      $region20: #{tpu_custom_call.1} parent=5 // pred_fallthru
        _
      %p234 = scmp.le.s32.totalorder 1, %s18
      %p235 = scmp.lt.s32.totalorder %s18, 3
      %p236 = pnand %p234, %p235
      %p237 = pneg %p236
      // Predicated region
      $region33: #{tpu_custom_call.1} parent=5 // pred_check
        _
      $region34: #{tpu_custom_call.1} parent=5 // pred_check_branch
        %239 = sbr.rel (%p236) target = $region36
      $region35: #{tpu_custom_call.1} parent=5 // pred_region
        %s240 = ssub.s32 %s18, 1
        %s241 = sadd.s32 %s27, %s28
        %p242 = scmp.lt.s32.totalorder %s241, 1
        %s243 = scalar_select %p242, %s241, 1
        %s244 = smul.addr %s243, 4
        %s245 = scalar_lea.vmem %s0, %s244
        %p246 = pneg %p58
        %p247 = pneg %p55
        %s248 = sadd.s32 %s27, %s28
        %p249 = scmp.lt.s32.totalorder %s248, 1
        %s250 = scalar_select %p249, %s248, 1
        %s251 = scalar_lea.vmem %s1, %s250
        %p252 = pneg %p86
        %p253 = pneg %p83
        %s254 = sadd.s32 %s27, %s28
        %p255 = scmp.lt.s32.totalorder %s254, 1
        %s256 = scalar_select %p255, %s254, 1
        %s257 = scalar_lea.vmem %s2, %s256
        %p258 = pneg %p114
        %p259 = pneg %p111
        %p260 = pneg %p135
        %p261 = pneg %p132
        %p262 = pneg %p161
        %p263 = pneg %p158
        %s264 = sand.u32 %s148, 1
        %s265 = scalar_lea.sflag [#allocation5], %s264
        %s266 = sand.u32 %s148, 1
        %s267 = smul.addr %s266, 8
        %s268 = scalar_lea.vmem [#allocation4], %s267
        %p269 = pneg %p187
        %p270 = pneg %p184
        %s271 = sand.u32 %s174, 1
        %s272 = scalar_lea.sflag [#allocation7], %s271
        %s273 = sand.u32 %s174, 1
        %s274 = smul.addr %s273, 8
        %s275 = scalar_lea.vmem [#allocation6], %s274
        %s276 = sadd.s32 %s27, %s28
        %p277 = scmp.lt.s32.totalorder %s276, 1
        %s278 = scalar_select %p277, %s276, 1
        %s279 = smul.addr %s278, 4
        %s280 = scalar_lea.vmem %s0, %s279
        %s281 = sadd.s32 %s27, %s28
        %s282 = sadd.s32 %s27, %s28
        %p283 = scmp.lt.s32.totalorder %s282, 1
        %s284 = scalar_select %p283, %s282, 1
        %s285 = scalar_lea.vmem %s1, %s284
        %s286 = sadd.s32 %s27, %s28
        %s287 = sadd.s32 %s27, %s28
        %p288 = scmp.lt.s32.totalorder %s287, 1
        %s289 = scalar_select %p288, %s287, 1
        %s290 = scalar_lea.vmem %s2, %s289
        %s291 = sadd.s32 %s27, %s28
        %p292 = scmp.eq.s32.totalorder %s28, 0
        // Predicated region
        $region37: #{tpu_custom_call.1} parent=35 // pred_check
          %p293 = pneg %p292
        $region38: #{tpu_custom_call.1} parent=35 // pred_check_branch
          %295 = sbr.rel (%p293) target = $region40
        $region39: #{tpu_custom_call.1} parent=35 // pred_region
          %vm296 = vcmask 0
          %297 = vst.msk [vmem:[#allocation2] sm:$0x1] %vm296, 0.0
          %298 = vst.msk [vmem:[#allocation3] sm:$0x1] %vm296, 0.0
        $region40: #{tpu_custom_call.1} parent=35 // pred_fallthru
          _
        %v299 = vld [vmem:[%s280] sm:$0xf]
        %v300 = vld [vmem:[%s285] sm:$0x1]
        %v301 = vld [vmem:[%s290] sm:$0x1]
        %v302 = vld [vmem:[%s3] sm:$0x3f]
        %v303 = vmul.f32 %v299, 1.442695
        %v304 = vpow.pop %v303
        %vm305 = vcmask 1043456
        %v306 = vsel %vm305, %v304, 0.0
        %v307 = vrot.slane %v306, 4
        %v308 = vadd.f32 %v306, %v307
        %v309 = vrot.slane %v308, 2
        %v310 = vadd.f32 %v308, %v309
        %v311 = vrot.slane %v310, 1
        %v312 = vadd.f32 %v310, %v311
        %v313 = vlaneseq
        %v314 = vshrl.u32 %v313, 7
        %v315 = vlaneseq
        %v316 = vshrl.u32 %v315, 7
        %v317 = vsub.s32 0, %v316
        %v318 = vrot.slane %v300, %v317
        %vm319 = vcmp.eq.s32.totalorder %v314, %v318
        %v320 = vsel %vm319, %v304, 0.0
        %v321 = vsel %vm305, %v320, 0.0
        %v322 = vrot.slane %v321, 4
        %v323 = vadd.f32 %v321, %v322
        %v324 = vrot.slane %v323, 2
        %v325 = vadd.f32 %v323, %v324
        %v326 = vrot.slane %v325, 1
        %v327 = vadd.f32 %v325, %v326
        %v328 = vrcp.pop %v312
        %v329 = vmul.f32 %v327, %v328
        %v330 = vadd.f32 %v329, 1e-08
        %v331 = vlog2.pop %v330
        %v332 = vmul.f32 %v331, 0.6931472
        %v333 = vsub.f32 0.0, %v332
        %v334 = vlaneseq
        %v335 = vshrl.u32 %v334, 7
        %v336 = vsub.s32 0, %v335
        %v337 = vrot.slane %v301, %v336
        %vm338 = vcmp.eq.s32.totalorder %v314, %v337
        %340 = vset.pattern.permute.xlu0 0
        %341 = vperm.xlu0 %340, %v302
        %v342 = vpop.permute.xlu0 %341
        %v344 = vsel %vm338, %v342, 0.0
        %vm345 = vcmask 1045504
        %v346 = vsel %vm345, %v344, 0.0
        %v347 = vrot.slane %v346, 4
        %v348 = vadd.f32 %v346, %v347
        %v349 = vrot.slane %v348, 2
        %v350 = vadd.f32 %v348, %v349
        %v351 = vrot.slane %v350, 1
        %v352 = vadd.f32 %v350, %v351
        %v353 = vld [vmem:[#allocation2] sm:$0x1]
        %v354 = vmul.f32 %v333, %v352
        %355 = vadd.xlane.f32.xlu0 %v354
        %v356 = vpop.xlane.xlu0 %355
        %v357 = vadd.f32 %v353, %v356
        %vm358 = vcmask 0
        %359 = vst.msk [vmem:[#allocation2] sm:$0x1] %vm358, %v357
        %v360 = vld [vmem:[#allocation3] sm:$0x1]
        %361 = vadd.xlane.f32.xlu0 %v352
        %v362 = vpop.xlane.xlu0 %361
        %v363 = vadd.f32 %v360, %v362
        %364 = vst.msk [vmem:[#allocation3] sm:$0x1] %vm358, %v363
        // Predicated region
        $region41: #{tpu_custom_call.1} parent=35 // pred_check
          %p365 = pneg %p292
        $region42: #{tpu_custom_call.1} parent=35 // pred_check_branch
          %367 = sbr.rel (%p365) target = $region44
        $region43: #{tpu_custom_call.1} parent=35 // pred_region
          %v368 = vld [vmem:[#allocation2] sm:$0x1]
          %v370 = vlaneseq
          %v371 = vshrl.u32 %v370, 7
          %v372 = vsub.s32 0, %v371
          %v373 = vrot.slane %v368, %v372
          %374 = vset.pattern.permute.xlu0 0
          %375 = vperm.xlu0 %374, %v373
          %v376 = vpop.permute.xlu0 %375
          %378 = vst [vmem:[%s268] sm:$0xff] %v376
          %v379 = vld [vmem:[#allocation3] sm:$0x1]
          %v381 = vlaneseq
          %v382 = vshrl.u32 %v381, 7
          %v383 = vsub.s32 0, %v382
          %v384 = vrot.slane %v379, %v383
          %385 = vset.pattern.permute.xlu0 0
          %386 = vperm.xlu0 %385, %v384
          %v387 = vpop.permute.xlu0 %386
          %389 = vst [vmem:[%s275] sm:$0xff] %v387
        $region44: #{tpu_custom_call.1} parent=35 // pred_fallthru
          _
        %s390 = sand.u32 %s148, 1
        %s391 = scalar_lea.sflag [#allocation5], %s390
        %s392 = sand.u32 %s148, 1
        %s393 = smul.addr %s392, 8
        %s394 = scalar_lea.vmem [#allocation4], %s393
        %s395 = sand.u32 %s174, 1
        %s396 = scalar_lea.sflag [#allocation7], %s395
        %s397 = sand.u32 %s174, 1
        %s398 = smul.addr %s397, 8
        %s399 = scalar_lea.vmem [#allocation6], %s398
        // Predicated region
        $region45: #{tpu_custom_call.1} parent=35 // pred_check
          %p400 = pneg %p158
        $region46: #{tpu_custom_call.1} parent=35 // pred_check_branch
          %402 = sbr.rel (%p400) target = $region48
        $region47: #{tpu_custom_call.1} parent=35 // pred_region
          %s404 = ssub.s32 128, 128
          %405 = vsyncadd %s391, %s404
          %s406 = smul.addr %s27, 128
          %s407 = scalar_lea.hbm %s4, %s406
          %s409 = sshll.u32 %s394, 4
          %s410 = int_to_ptr.vmem [resolvable:$true] %s409
          %412 = dma.vmem_to_hbm [thread:$0]  %s410, 128, %s407, %s391
        $region48: #{tpu_custom_call.1} parent=35 // pred_fallthru
          _
        // Predicated region
        $region49: #{tpu_custom_call.1} parent=35 // pred_check
          %p413 = pneg %p184
        $region50: #{tpu_custom_call.1} parent=35 // pred_check_branch
          %415 = sbr.rel (%p413) target = $region52
        $region51: #{tpu_custom_call.1} parent=35 // pred_region
          %s417 = ssub.s32 128, 128
          %418 = vsyncadd %s396, %s417
          %s419 = smul.addr %s27, 128
          %s420 = scalar_lea.hbm %s5, %s419
          %s422 = sshll.u32 %s399, 4
          %s423 = int_to_ptr.vmem [resolvable:$true] %s422
          %425 = dma.vmem_to_hbm [thread:$0]  %s423, 128, %s420, %s396
        $region52: #{tpu_custom_call.1} parent=35 // pred_fallthru
          _
      $region36: #{tpu_custom_call.1} parent=5 // pred_fallthru
        _
      %p426 = scmp.le.s32.totalorder 2, %s18
      // Predicated region
      $region53: #{tpu_custom_call.1} parent=5 // pred_check
        %p427 = pneg %p426
      $region54: #{tpu_custom_call.1} parent=5 // pred_check_branch
        %429 = sbr.rel (%p427) target = $region56
      $region55: #{tpu_custom_call.1} parent=5 // pred_region
        %s430 = ssub.s32 %s18, 2
        // Predicated region
        $region57: #{tpu_custom_call.1} parent=55 // pred_check
          %p431 = pneg %p164
        $region58: #{tpu_custom_call.1} parent=55 // pred_check_branch
          %433 = sbr.rel (%p431) target = $region60
        $region59: #{tpu_custom_call.1} parent=55 // pred_region
          %s434 = sand.u32 %s149, 1
          %s435 = scalar_lea.sflag [#allocation5], %s434
          %s436 = sand.u32 %s149, 1
          %s437 = smul.addr %s436, 8
          %s438 = scalar_lea.vmem [#allocation4], %s437
          %439 = dma.done %s435, 128
        $region60: #{tpu_custom_call.1} parent=55 // pred_fallthru
          _
        // Predicated region
        $region61: #{tpu_custom_call.1} parent=55 // pred_check
          %p440 = pneg %p190
        $region62: #{tpu_custom_call.1} parent=55 // pred_check_branch
          %442 = sbr.rel (%p440) target = $region64
        $region63: #{tpu_custom_call.1} parent=55 // pred_region
          %s443 = sand.u32 %s175, 1
          %s444 = scalar_lea.sflag [#allocation7], %s443
          %s445 = sand.u32 %s175, 1
          %s446 = smul.addr %s445, 8
          %s447 = scalar_lea.vmem [#allocation6], %s446
          %448 = dma.done %s444, 128
        $region64: #{tpu_custom_call.1} parent=55 // pred_fallthru
          _
      $region56: #{tpu_custom_call.1} parent=5 // pred_fallthru
        _
    $region6: #{tpu_custom_call.1} parent=1 // loop_footer
      %s22 = sadd.s32 1, %s18
    $region7: #{tpu_custom_call.1} parent=1 // loop_footer_branch
      %17 = sbr.rel target = $region3
    $region8: #{tpu_custom_call.1} parent=1 // loop_exit
      _
    %449 = vsyncpa [#allocation5], 1
    %s450 = scalar_lea.sflag [#allocation5], 1
    %451 = vsyncpa %s450, 1
    %452 = vsyncpa [#allocation7], 1
    %s453 = scalar_lea.sflag [#allocation7], 1
    %454 = vsyncpa %s453, 1

</llo_original>
